<compile_context>
chip_gen: v6e
topology: v6e:2x2x1
jax: 0.10.0
libtpu: 0.0.40
codegen_flags: <defaults>
</compile_context>

<pallas_src>
import functools

import numpy as np
import jax
import jax.numpy as jnp
from jax import lax
from jax.experimental import pallas as pl
from jax.experimental.pallas import tpu as pltpu

EPS = 1e-5


# --------------------------------- kernel ------------------------------------
def basic_block_kernel(x_ref, wb_ref, bn_ref, p_ref, out_ref, *, H, inv_n):
    """One VMEM-resident BasicBlock on a lane-dense (H, B*W*C) slab."""
    x = x_ref[...]                                   # (H, BWC) f32
    P = p_ref[...]                                   # (BWC, BWC) channel-group matrix
    bn = bn_ref[...]                                 # (4, BWC): g1, b1, g2, b2 pre-tiled
    g1, b1 = bn[0:1, :], bn[1:2, :]
    g2, b2 = bn[2:3, :], bn[3:4, :]

    row = lax.broadcasted_iota(jnp.int32, (H, 1), 0)
    top_ok = row > 0                                 # row h-1 exists (image top pad)
    bot_ok = row < H - 1                             # row h+1 exists (image bottom pad)

    def conv3x3(u, w_slab):
        # Vertical taps via XLU sublane rotations; the wrapped boundary rows are
        # zeroed by the masks.  Horizontal taps + zero padding live inside the
        # banded block-Toeplitz weight, so the whole 3x3 conv is ONE matmul
        # with K = 3*B*W*Cin (= 384 here), N = B*W*Cout (= 128 here).
        u_up = jnp.where(top_ok, pltpu.roll(u, shift=1, axis=0), 0.0)      # row h -> u[h-1]
        u_dn = jnp.where(bot_ok, pltpu.roll(u, shift=H - 1, axis=0), 0.0)  # row h -> u[h+1]
        u_cat = jnp.concatenate([u_up, u, u_dn], axis=1)                   # (H, 3*BWC)
        return jnp.dot(u_cat, w_slab, preferred_element_type=jnp.float32)

    def bn_train(y, gamma, beta):
        # Training-mode BatchNorm2d (biased variance, eps=EPS), fused in lane
        # layout: one read of y, then a single (2, BWC) x (BWC, BWC) matmul both
        # folds the per-channel totals and re-broadcasts them to all lanes.
        col_s = jnp.sum(y, axis=0, keepdims=True)                  # (1, BWC)
        col_ss = jnp.sum(y * y, axis=0, keepdims=True)             # (1, BWC)
        stats = jnp.concatenate([col_s, col_ss], axis=0)           # (2, BWC)
        stats = jnp.dot(stats, P, preferred_element_type=jnp.float32)
        mean = stats[0:1, :] * inv_n
        ex2 = stats[1:2, :] * inv_n
        # TODO(synk): single-pass E[x^2]-mean^2 variance; switch to a two-pass /
        # shifted variance at real scales or if bf16 MXU operands are adopted.
        var = ex2 - mean * mean
        scale = gamma * lax.rsqrt(var + EPS)                       # (1, BWC)
        shift = beta - mean * scale                                # (1, BWC)
        return y * scale + shift

    # conv1 -> bn1 -> relu
    y = conv3x3(x, wb_ref[0])
    y = jnp.maximum(bn_train(y, g1, b1), 0.0)
    # conv2 -> bn2 -> + residual -> relu
    z = conv3x3(y, wb_ref[1])
    z = bn_train(z, g2, b2)
    out_ref[...] = jnp.maximum(z + x, 0.0)


# ------------------------------- host wrapper ---------------------------------
def _banded_weights(w_hwio, B, W):
    """(3,3,Cin,Cout) HWIO -> (3*B*W*Cin, B*W*Cout) block-Toeplitz weight.

    K layout matches [x_up | x | x_dn] lane-concat: K = dy*B*W*Cin + b*W*Cin +
    wi*Cin + cin; N = b*W*Cout + wo*Cout + cout.  Batch blocks are diagonal;
    out-of-range horizontal taps are structural zeros (= SAME zero padding).
    One-time host-side construction.
    """
    w = np.asarray(w_hwio, dtype=np.float32)
    Cin, Cout = w.shape[2], w.shape[3]
    WCin, WCout = W * Cin, W * Cout
    band = np.zeros((3, WCin, WCout), np.float32)
    for dy in range(3):
        for dx in range(3):
            for wo in range(W):                  # output spatial position
                wi = wo + dx - 1                 # input spatial position
                if 0 <= wi < W:
                    band[dy, wi * Cin:(wi + 1) * Cin, wo * Cout:(wo + 1) * Cout] = w[dy, dx]
    wb = np.zeros((3 * B * WCin, B * WCout), np.float32)
    for dy in range(3):
        for b in range(B):
            r0 = (dy * B + b) * WCin
            c0 = b * WCout
            wb[r0:r0 + WCin, c0:c0 + WCout] = band[dy]
    return wb


def basic_block(x_nhwc, w1, w2, g1, b1, g2, b2):
    """x_nhwc: (B,H,W,C) f32; w: (3,3,Cin,Cout) HWIO; g/b: (C,)."""
    B, H, W, C = x_nhwc.shape
    BWC = B * W * C

    # Lane-dense slab: (B,H,W,C) -> (H, B, W, C) -> (H, B*W*C).  The transpose
    # is wrapper glue (handled by XLA outside the kernel).
    x2d = jnp.transpose(x_nhwc, (1, 0, 2, 3)).reshape(H, BWC)

    # Packed conv weights (2 convs).  NOTE: this representation is O((B*W*C)^2)
    # in VMEM; it is the right call only at small channel counts.  Switch to
    # per-tap (Cin,Cout) matmuls / K-tiled banding before B*W*C ~ 1k
    # (3*BWC^2*4 B per conv already ~12 MB at BWC=1024; v7x has 64 MiB VMEM).
    assert BWC <= 1024, "banded block-Toeplitz weights too large; change representation"
    wb = jnp.asarray(np.stack([_banded_weights(w1, B, W),
                               _banded_weights(w2, B, W)], axis=0))      # (2, 3*BWC, BWC)

    # Packed BN affine params, pre-tiled to the lane layout: rows = g1,b1,g2,b2.
    bn = jnp.stack([jnp.tile(g1, B * W), jnp.tile(b1, B * W),
                    jnp.tile(g2, B * W), jnp.tile(b2, B * W)],
                   axis=0).astype(jnp.float32)                           # (4, BWC)

    # Channel-group matrix: P[i, j] = 1 iff lane i and lane j hold the same channel.
    lane = np.arange(BWC)
    p = jnp.asarray((lane[:, None] % C == lane[None, :] % C).astype(np.float32))

    kern = functools.partial(basic_block_kernel, H=H, inv_n=1.0 / float(B * H * W))
    vmem = pl.BlockSpec(memory_space=pltpu.MemorySpace.VMEM)
    out2d = pl.pallas_call(
        kern,
        out_shape=jax.ShapeDtypeStruct((H, BWC), jnp.float32),
        in_specs=[vmem] * 4,
        out_specs=vmem,
        compiler_params=pltpu.CompilerParams(vmem_limit_bytes=8 * 1024 * 1024),
    )(x2d, wb, bn, p)

    return jnp.transpose(out2d.reshape(H, B, W, C), (1, 0, 2, 3))


# ---------------------------- pure-JAX reference ------------------------------
def _bn_train_ref(x, gamma, beta):
    mean = jnp.mean(x, axis=(0, 1, 2), keepdims=True)
    var = jnp.mean((x - mean) ** 2, axis=(0, 1, 2), keepdims=True)
    return (x - mean) * lax.rsqrt(var + EPS) * gamma + beta


def reference(x_nhwc, w1, w2, g1, b1, g2, b2):
    dn = ('NHWC', 'HWIO', 'NHWC')
    c1 = lax.conv_general_dilated(x_nhwc, w1, (1, 1), 'SAME', dimension_numbers=dn)
    y = jnp.maximum(_bn_train_ref(c1, g1, b1), 0.0)
    c2 = lax.conv_general_dilated(y, w2, (1, 1), 'SAME', dimension_numbers=dn)
    z = _bn_train_ref(c2, g2, b2)
    return jnp.maximum(z + x_nhwc, 0.0)


if __name__ == "__main__":
    # Small shapes consistent with BasicBlock(inplanes=4, planes=4, stride=1).
    B, C, H, W = 2, 4, 16, 16
    key = jax.random.PRNGKey(0)
    kx, kw1, kw2, kg1, kb1, kg2, kb2 = jax.random.split(key, 7)

    x_nchw = jax.random.normal(kx, (B, C, H, W), dtype=jnp.float32)
    fan_in = C * 3 * 3
    w1 = jax.random.normal(kw1, (3, 3, C, C), dtype=jnp.float32) / np.sqrt(fan_in)
    w2 = jax.random.normal(kw2, (3, 3, C, C), dtype=jnp.float32) / np.sqrt(fan_in)
    g1 = 1.0 + 0.1 * jax.random.normal(kg1, (C,), dtype=jnp.float32)
    b1 = 0.1 * jax.random.normal(kb1, (C,), dtype=jnp.float32)
    g2 = 1.0 + 0.1 * jax.random.normal(kg2, (C,), dtype=jnp.float32)
    b2 = 0.1 * jax.random.normal(kb2, (C,), dtype=jnp.float32)

    x_nhwc = jnp.transpose(x_nchw, (0, 2, 3, 1))   # NCHW -> NHWC (glue)

    out = basic_block(x_nhwc, w1, w2, g1, b1, g2, b2)
    out = jax.block_until_ready(out)

    ref = reference(x_nhwc, w1, w2, g1, b1, g2, b2)
    np.testing.assert_allclose(np.asarray(out), np.asarray(ref), rtol=2e-4, atol=2e-4)

    print("KERNEL_OK")
</pallas_src>

<mosaic_0001>
module attributes {stable_mosaic.version = 11 : i64} {
  func.func @basic_block_kernel(%arg0: memref<16x128xf32, #tpu.memory_space<vmem>>, %arg1: memref<2x384x128xf32, #tpu.memory_space<vmem>>, %arg2: memref<4x128xf32, #tpu.memory_space<vmem>>, %arg3: memref<128x128xf32, #tpu.memory_space<vmem>>, %arg4: memref<16x128xf32, #tpu.memory_space<vmem>>) attributes {dimension_semantics = [], scalar_prefetch = 0 : i64, scratch_operands = 0 : i64, tpu.core_type = #tpu.core_type<tc>} {
    %c0 = arith.constant 0 : index
    %c0_0 = arith.constant 0 : index
    %0 = vector.load %arg0[%c0, %c0_0] : memref<16x128xf32, #tpu.memory_space<vmem>>, vector<16x128xf32>
    %c0_1 = arith.constant 0 : index
    %c0_2 = arith.constant 0 : index
    %1 = vector.load %arg3[%c0_1, %c0_2] : memref<128x128xf32, #tpu.memory_space<vmem>>, vector<128x128xf32>
    %c0_3 = arith.constant 0 : index
    %c0_4 = arith.constant 0 : index
    %2 = vector.load %arg2[%c0_3, %c0_4] : memref<4x128xf32, #tpu.memory_space<vmem>>, vector<4x128xf32>
    %3 = vector.extract_strided_slice %2 {offsets = [0, 0], sizes = [1, 128], strides = [1, 1]} : vector<4x128xf32> to vector<1x128xf32>
    %4 = vector.extract_strided_slice %2 {offsets = [1, 0], sizes = [1, 128], strides = [1, 1]} : vector<4x128xf32> to vector<1x128xf32>
    %5 = vector.extract_strided_slice %2 {offsets = [2, 0], sizes = [1, 128], strides = [1, 1]} : vector<4x128xf32> to vector<1x128xf32>
    %6 = vector.extract_strided_slice %2 {offsets = [3, 0], sizes = [1, 128], strides = [1, 1]} : vector<4x128xf32> to vector<1x128xf32>
    %7 = tpu.iota {dimensions = array<i32: 0>} : vector<16x1xi32>
    %c0_i32 = arith.constant 0 : i32
    %8 = vector.broadcast %c0_i32 : i32 to vector<16x1xi32>
    %9 = arith.cmpi sgt, %7, %8 : vector<16x1xi32>
    %c15_i32 = arith.constant 15 : i32
    %10 = vector.broadcast %c15_i32 : i32 to vector<16x1xi32>
    %11 = arith.cmpi slt, %7, %10 : vector<16x1xi32>
    %c0_5 = arith.constant 0 : index
    %c0_6 = arith.constant 0 : index
    %c0_7 = arith.constant 0 : index
    %12 = vector.load %arg1[%c0_5, %c0_6, %c0_7] : memref<2x384x128xf32, #tpu.memory_space<vmem>>, vector<1x384x128xf32>
    %13 = vector.shape_cast %12 : vector<1x384x128xf32> to vector<384x128xf32>
    %c1_i32 = arith.constant 1 : i32
    %14 = tpu.dynamic_rotate %0 by %c1_i32 dim 0 : vector<16x128xf32>, i32 -> vector<16x128xf32>
    %cst = arith.constant 0.000000e+00 : f32
    %15 = vector.shape_cast %9 : vector<16x1xi1> to vector<16x1xi1>
    %16 = vector.broadcast %15 : vector<16x1xi1> to vector<16x128xi1>
    %17 = vector.broadcast %cst : f32 to vector<16x128xf32>
    %18 = arith.select %16, %14, %17 : vector<16x128xi1>, vector<16x128xf32>
    %c15_i32_8 = arith.constant 15 : i32
    %19 = tpu.dynamic_rotate %0 by %c15_i32_8 dim 0 : vector<16x128xf32>, i32 -> vector<16x128xf32>
    %cst_9 = arith.constant 0.000000e+00 : f32
    %20 = vector.shape_cast %11 : vector<16x1xi1> to vector<16x1xi1>
    %21 = vector.broadcast %20 : vector<16x1xi1> to vector<16x128xi1>
    %22 = vector.broadcast %cst_9 : f32 to vector<16x128xf32>
    %23 = arith.select %21, %19, %22 : vector<16x128xi1>, vector<16x128xf32>
    %24 = tpu.concatenate %18, %0, %23 in 1 : vector<16x128xf32>, vector<16x128xf32>, vector<16x128xf32> -> vector<16x384xf32>
    %cst_10 = arith.constant dense<0.000000e+00> : vector<16x128xf32>
    %25 = tpu.matmul %24, %13, %cst_10 {dimension_numbers = #tpu.dot_dimension_numbers<[1], [0], [0], [1], [0, 0, 1, 1], [], []>} : vector<16x384xf32>, vector<384x128xf32>, vector<16x128xf32> -> vector<16x128xf32>
    %cst_11 = arith.constant dense<0.000000e+00> : vector<128xf32>
    %26 = vector.multi_reduction <add>, %25, %cst_11 [0] : vector<16x128xf32> to vector<128xf32>
    %27 = vector.shape_cast %26 : vector<128xf32> to vector<1x128xf32>
    %28 = arith.mulf %25, %25 : vector<16x128xf32>
    %cst_12 = arith.constant dense<0.000000e+00> : vector<128xf32>
    %29 = vector.multi_reduction <add>, %28, %cst_12 [0] : vector<16x128xf32> to vector<128xf32>
    %30 = vector.shape_cast %29 : vector<128xf32> to vector<1x128xf32>
    %31 = tpu.concatenate %27, %30 in 0 : vector<1x128xf32>, vector<1x128xf32> -> vector<2x128xf32>
    %cst_13 = arith.constant dense<0.000000e+00> : vector<2x128xf32>
    %32 = tpu.matmul %31, %1, %cst_13 {dimension_numbers = #tpu.dot_dimension_numbers<[1], [0], [0], [1], [0, 0, 1, 1], [], []>} : vector<2x128xf32>, vector<128x128xf32>, vector<2x128xf32> -> vector<2x128xf32>
    %33 = vector.extract_strided_slice %32 {offsets = [0, 0], sizes = [1, 128], strides = [1, 1]} : vector<2x128xf32> to vector<1x128xf32>
    %cst_14 = arith.constant 0.001953125 : f32
    %34 = vector.broadcast %cst_14 : f32 to vector<1x128xf32>
    %35 = arith.mulf %33, %34 : vector<1x128xf32>
    %36 = vector.extract_strided_slice %32 {offsets = [1, 0], sizes = [1, 128], strides = [1, 1]} : vector<2x128xf32> to vector<1x128xf32>
    %cst_15 = arith.constant 0.001953125 : f32
    %37 = vector.broadcast %cst_15 : f32 to vector<1x128xf32>
    %38 = arith.mulf %36, %37 : vector<1x128xf32>
    %39 = arith.mulf %35, %35 : vector<1x128xf32>
    %40 = arith.subf %38, %39 : vector<1x128xf32>
    %cst_16 = arith.constant 9.99999974E-6 : f32
    %41 = vector.broadcast %cst_16 : f32 to vector<1x128xf32>
    %42 = arith.addf %40, %41 : vector<1x128xf32>
    %43 = math.rsqrt %42 : vector<1x128xf32>
    %44 = arith.mulf %3, %43 : vector<1x128xf32>
    %45 = arith.mulf %35, %44 : vector<1x128xf32>
    %46 = arith.subf %4, %45 : vector<1x128xf32>
    %47 = vector.broadcast %44 : vector<1x128xf32> to vector<16x128xf32>
    %48 = arith.mulf %25, %47 : vector<16x128xf32>
    %49 = vector.broadcast %46 : vector<1x128xf32> to vector<16x128xf32>
    %50 = arith.addf %48, %49 : vector<16x128xf32>
    %cst_17 = arith.constant 0.000000e+00 : f32
    %51 = vector.broadcast %cst_17 : f32 to vector<16x128xf32>
    %52 = arith.maximumf %50, %51 : vector<16x128xf32>
    %c1 = arith.constant 1 : index
    %c0_18 = arith.constant 0 : index
    %c0_19 = arith.constant 0 : index
    %53 = vector.load %arg1[%c1, %c0_18, %c0_19] : memref<2x384x128xf32, #tpu.memory_space<vmem>>, vector<1x384x128xf32>
    %54 = vector.shape_cast %53 : vector<1x384x128xf32> to vector<384x128xf32>
    %c1_i32_20 = arith.constant 1 : i32
    %55 = tpu.dynamic_rotate %52 by %c1_i32_20 dim 0 : vector<16x128xf32>, i32 -> vector<16x128xf32>
    %cst_21 = arith.constant 0.000000e+00 : f32
    %56 = vector.shape_cast %9 : vector<16x1xi1> to vector<16x1xi1>
    %57 = vector.broadcast %56 : vector<16x1xi1> to vector<16x128xi1>
    %58 = vector.broadcast %cst_21 : f32 to vector<16x128xf32>
    %59 = arith.select %57, %55, %58 : vector<16x128xi1>, vector<16x128xf32>
    %c15_i32_22 = arith.constant 15 : i32
    %60 = tpu.dynamic_rotate %52 by %c15_i32_22 dim 0 : vector<16x128xf32>, i32 -> vector<16x128xf32>
    %cst_23 = arith.constant 0.000000e+00 : f32
    %61 = vector.shape_cast %11 : vector<16x1xi1> to vector<16x1xi1>
    %62 = vector.broadcast %61 : vector<16x1xi1> to vector<16x128xi1>
    %63 = vector.broadcast %cst_23 : f32 to vector<16x128xf32>
    %64 = arith.select %62, %60, %63 : vector<16x128xi1>, vector<16x128xf32>
    %65 = tpu.concatenate %59, %52, %64 in 1 : vector<16x128xf32>, vector<16x128xf32>, vector<16x128xf32> -> vector<16x384xf32>
    %cst_24 = arith.constant dense<0.000000e+00> : vector<16x128xf32>
    %66 = tpu.matmul %65, %54, %cst_24 {dimension_numbers = #tpu.dot_dimension_numbers<[1], [0], [0], [1], [0, 0, 1, 1], [], []>} : vector<16x384xf32>, vector<384x128xf32>, vector<16x128xf32> -> vector<16x128xf32>
    %cst_25 = arith.constant dense<0.000000e+00> : vector<128xf32>
    %67 = vector.multi_reduction <add>, %66, %cst_25 [0] : vector<16x128xf32> to vector<128xf32>
    %68 = vector.shape_cast %67 : vector<128xf32> to vector<1x128xf32>
    %69 = arith.mulf %66, %66 : vector<16x128xf32>
    %cst_26 = arith.constant dense<0.000000e+00> : vector<128xf32>
    %70 = vector.multi_reduction <add>, %69, %cst_26 [0] : vector<16x128xf32> to vector<128xf32>
    %71 = vector.shape_cast %70 : vector<128xf32> to vector<1x128xf32>
    %72 = tpu.concatenate %68, %71 in 0 : vector<1x128xf32>, vector<1x128xf32> -> vector<2x128xf32>
    %cst_27 = arith.constant dense<0.000000e+00> : vector<2x128xf32>
    %73 = tpu.matmul %72, %1, %cst_27 {dimension_numbers = #tpu.dot_dimension_numbers<[1], [0], [0], [1], [0, 0, 1, 1], [], []>} : vector<2x128xf32>, vector<128x128xf32>, vector<2x128xf32> -> vector<2x128xf32>
    %74 = vector.extract_strided_slice %73 {offsets = [0, 0], sizes = [1, 128], strides = [1, 1]} : vector<2x128xf32> to vector<1x128xf32>
    %cst_28 = arith.constant 0.001953125 : f32
    %75 = vector.broadcast %cst_28 : f32 to vector<1x128xf32>
    %76 = arith.mulf %74, %75 : vector<1x128xf32>
    %77 = vector.extract_strided_slice %73 {offsets = [1, 0], sizes = [1, 128], strides = [1, 1]} : vector<2x128xf32> to vector<1x128xf32>
    %cst_29 = arith.constant 0.001953125 : f32
    %78 = vector.broadcast %cst_29 : f32 to vector<1x128xf32>
    %79 = arith.mulf %77, %78 : vector<1x128xf32>
    %80 = arith.mulf %76, %76 : vector<1x128xf32>
    %81 = arith.subf %79, %80 : vector<1x128xf32>
    %cst_30 = arith.constant 9.99999974E-6 : f32
    %82 = vector.broadcast %cst_30 : f32 to vector<1x128xf32>
    %83 = arith.addf %81, %82 : vector<1x128xf32>
    %84 = math.rsqrt %83 : vector<1x128xf32>
    %85 = arith.mulf %5, %84 : vector<1x128xf32>
    %86 = arith.mulf %76, %85 : vector<1x128xf32>
    %87 = arith.subf %6, %86 : vector<1x128xf32>
    %88 = vector.broadcast %85 : vector<1x128xf32> to vector<16x128xf32>
    %89 = arith.mulf %66, %88 : vector<16x128xf32>
    %90 = vector.broadcast %87 : vector<1x128xf32> to vector<16x128xf32>
    %91 = arith.addf %89, %90 : vector<16x128xf32>
    %92 = arith.addf %91, %0 : vector<16x128xf32>
    %cst_31 = arith.constant 0.000000e+00 : f32
    %93 = vector.broadcast %cst_31 : f32 to vector<16x128xf32>
    %94 = arith.maximumf %92, %93 : vector<16x128xf32>
    %c0_32 = arith.constant 0 : index
    %c0_33 = arith.constant 0 : index
    %95 = vector.load %arg4[%c0_32, %c0_33] : memref<16x128xf32, #tpu.memory_space<vmem>>, vector<16x128xf32>
    tpu.vector_store %arg4[%c0_32, %c0_33], %94 {strides = array<i32>} : memref<16x128xf32, #tpu.memory_space<vmem>>, vector<16x128xf32>,
    return
  }
}

</mosaic_0001>

<llo_original>
// kernel: tpu_custom_call.1
$region0: #{tpu_custom_call.1}
  #allocation0 [shape = 'u32[]', space=smem, size = 0x4, offset = 0x4, fixed_abs, tag = 'smem constant byte address 0x4 - core index']
  #allocation1 [shape = 'u32[144,128]{1,0:T(1,128)}', space=vmem, size = 0x12000, scoped, tag = 'internal scratch']
  %s0 = inlined_call_operand.hbm [shape: f32[16,128], index: 0, kind: input, shape index: {}]
  %s1 = inlined_call_operand.hbm [shape: f32[2,384,128], index: 1, kind: input, shape index: {}]
  %s2 = inlined_call_operand.hbm [shape: f32[4,128], index: 2, kind: input, shape index: {}]
  %s3 = inlined_call_operand.hbm [shape: f32[128,128], index: 3, kind: input, shape index: {}]
  %s4 = inlined_call_operand.hbm [shape: f32[16,128], index: 4, kind: output, shape index: {}]
  %s5 = sld [smem:[#allocation0]]
  $region42: #{tpu_custom_call.1} parent=0
    _
  %s7 = ssub.s32 1, %s5
  %s8 = scalar_select 0, %s7, %s5
  $region1: #{tpu_custom_call.1} parent=0
    #allocation2 [shape = 'u8[8192]{0}', space=vmem, size = 0x2000, scoped, tag = 'input window, operand 0, single buffered']
    #allocation3 [shape = 's32[1]{0}', space=sflag, size = 0x4, scoped, tag = 'scoped memory for tpu_custom_call.1']
    #allocation4 [shape = 's32[1]{0}', space=sflag, size = 0x4, scoped, tag = 'scoped memory for tpu_custom_call.1']
    #allocation5 [shape = 'u8[393216]{0}', space=vmem, size = 0x60000, scoped, tag = 'input window, operand 1, single buffered']
    #allocation6 [shape = 's32[1]{0}', space=sflag, size = 0x4, scoped, tag = 'scoped memory for tpu_custom_call.1']
    #allocation7 [shape = 'u8[2048]{0}', space=vmem, size = 0x800, scoped, tag = 'input window, operand 2, single buffered']
    #allocation8 [shape = 'u8[65536]{0}', space=vmem, size = 0x10000, scoped, tag = 'input window, operand 3, single buffered']
    #allocation9 [shape = 's32[1]{0}', space=sflag, size = 0x4, scoped, tag = 'scoped memory for tpu_custom_call.1']
    #allocation10 [shape = 'u8[8192]{0}', space=vmem, size = 0x2000, scoped, tag = 'output window, operand 0, single buffered']
    %9 = vsyncpa [#allocation3], 0
    %10 = vsyncpa [#allocation6], 0
    %11 = vsyncpa [#allocation9], 0
    %12 = vsyncpa [#allocation4], 0
    // Predicated region
    $region2: #{tpu_custom_call.1} parent=1 // pred_check
      _
    $region3: #{tpu_custom_call.1} parent=1 // pred_check_branch
      %14 = sbr.rel (0) target = $region5
    $region4: #{tpu_custom_call.1} parent=1 // pred_region
      %s16 = ssub.s32 256, 256
      %17 = vsyncadd [#allocation3], %s16
      %s18 = sshll.u32 [#allocation2], 4
      %s19 = int_to_ptr.vmem [resolvable:$true] %s18
      %24 = dma.hbm_to_vmem [thread:$0]  %s0, 256, %s19, [#allocation3], 128, 128, 8
    $region5: #{tpu_custom_call.1} parent=1 // pred_fallthru
      _
    // Predicated region
    $region6: #{tpu_custom_call.1} parent=1 // pred_check
      _
    $region7: #{tpu_custom_call.1} parent=1 // pred_check_branch
      %26 = sbr.rel (0) target = $region9
    $region8: #{tpu_custom_call.1} parent=1 // pred_region
      %s28 = ssub.s32 12288, 12288
      %29 = vsyncadd [#allocation6], %s28
      %s30 = sshll.u32 [#allocation5], 4
      %s31 = int_to_ptr.vmem [resolvable:$true] %s30
      %36 = dma.hbm_to_vmem [thread:$0]  %s1, 12288, %s31, [#allocation6], 128, 128, 8
    $region9: #{tpu_custom_call.1} parent=1 // pred_fallthru
      _
    // Predicated region
    $region10: #{tpu_custom_call.1} parent=1 // pred_check
      _
    $region11: #{tpu_custom_call.1} parent=1 // pred_check_branch
      %38 = sbr.rel (0) target = $region13
    $region12: #{tpu_custom_call.1} parent=1 // pred_region
      %s40 = ssub.s32 64, 64
      %41 = vsyncadd [#allocation6], %s40
      %s43 = sshll.u32 [#allocation7], 4
      %s44 = int_to_ptr.vmem [resolvable:$true] %s43
      %46 = dma.hbm_to_vmem [thread:$0]  %s2, 64, %s44, [#allocation6]
    $region13: #{tpu_custom_call.1} parent=1 // pred_fallthru
      _
    // Predicated region
    $region14: #{tpu_custom_call.1} parent=1 // pred_check
      _
    $region15: #{tpu_custom_call.1} parent=1 // pred_check_branch
      %48 = sbr.rel (0) target = $region17
    $region16: #{tpu_custom_call.1} parent=1 // pred_region
      %s50 = ssub.s32 2048, 2048
      %51 = vsyncadd [#allocation9], %s50
      %s52 = sshll.u32 [#allocation8], 4
      %s53 = int_to_ptr.vmem [resolvable:$true] %s52
      %58 = dma.hbm_to_vmem [thread:$0]  %s3, 2048, %s53, [#allocation9], 128, 128, 8
    $region17: #{tpu_custom_call.1} parent=1 // pred_fallthru
      _
    // Predicated region
    $region18: #{tpu_custom_call.1} parent=1 // pred_check
      _
    $region19: #{tpu_custom_call.1} parent=1 // pred_check_branch
      %60 = sbr.rel (0) target = $region21
    $region20: #{tpu_custom_call.1} parent=1 // pred_region
      %61 = dma.done [#allocation3], 256
    $region21: #{tpu_custom_call.1} parent=1 // pred_fallthru
      _
    // Predicated region
    $region22: #{tpu_custom_call.1} parent=1 // pred_check
      _
    $region23: #{tpu_custom_call.1} parent=1 // pred_check_branch
      %63 = sbr.rel (0) target = $region25
    $region24: #{tpu_custom_call.1} parent=1 // pred_region
      %64 = dma.done [#allocation6], 12288
    $region25: #{tpu_custom_call.1} parent=1 // pred_fallthru
      _
    // Predicated region
    $region26: #{tpu_custom_call.1} parent=1 // pred_check
      _
    $region27: #{tpu_custom_call.1} parent=1 // pred_check_branch
      %66 = sbr.rel (0) target = $region29
    $region28: #{tpu_custom_call.1} parent=1 // pred_region
      %67 = dma.done [#allocation6], 64
    $region29: #{tpu_custom_call.1} parent=1 // pred_fallthru
      _
    // Predicated region
    $region30: #{tpu_custom_call.1} parent=1 // pred_check
      _
    $region31: #{tpu_custom_call.1} parent=1 // pred_check_branch
      %69 = sbr.rel (0) target = $region33
    $region32: #{tpu_custom_call.1} parent=1 // pred_region
      %70 = dma.done [#allocation9], 2048
    $region33: #{tpu_custom_call.1} parent=1 // pred_fallthru
      _
    %v71 = vld [vmem:[#allocation2] sm:$0xff]
    %v72 = vld [vmem:[#allocation2 + $0x8] sm:$0xff]
    %v73 = vld [vmem:[#allocation8] sm:$0xff]
    %v74 = vld [vmem:[#allocation8 + $0x8] sm:$0xff]
    %v75 = vld [vmem:[#allocation8 + $0x10] sm:$0xff]
    %v76 = vld [vmem:[#allocation8 + $0x18] sm:$0xff]
    %v77 = vld [vmem:[#allocation8 + $0x20] sm:$0xff]
    %v78 = vld [vmem:[#allocation8 + $0x28] sm:$0xff]
    %v79 = vld [vmem:[#allocation8 + $0x30] sm:$0xff]
    %v80 = vld [vmem:[#allocation8 + $0x38] sm:$0xff]
    %v81 = vld [vmem:[#allocation8 + $0x40] sm:$0xff]
    %v82 = vld [vmem:[#allocation8 + $0x48] sm:$0xff]
    %v83 = vld [vmem:[#allocation8 + $0x50] sm:$0xff]
    %v84 = vld [vmem:[#allocation8 + $0x58] sm:$0xff]
    %v85 = vld [vmem:[#allocation8 + $0x60] sm:$0xff]
    %v86 = vld [vmem:[#allocation8 + $0x68] sm:$0xff]
    %v87 = vld [vmem:[#allocation8 + $0x70] sm:$0xff]
    %v88 = vld [vmem:[#allocation8 + $0x78] sm:$0xff]
    %v89 = vld [vmem:[#allocation7] sm:$0xf]
    %v90 = vlaneseq
    %v91 = vshrl.u32 %v90, 7
    %v92 = vadd.s32 %v91, 8
    %vm93 = vcmp.gt.s32.totalorder %v91, 0
    %vm94 = vcmp.gt.s32.totalorder %v92, 0
    %vm95 = vcmp.lt.s32.totalorder %v91, 15
    %vm96 = vcmp.lt.s32.totalorder %v92, 15
    %v97 = vld [vmem:[#allocation5] sm:$0xff]
    %v98 = vld [vmem:[#allocation5 + $0x8] sm:$0xff]
    %v99 = vld [vmem:[#allocation5 + $0x10] sm:$0xff]
    %v100 = vld [vmem:[#allocation5 + $0x18] sm:$0xff]
    %v101 = vld [vmem:[#allocation5 + $0x20] sm:$0xff]
    %v102 = vld [vmem:[#allocation5 + $0x28] sm:$0xff]
    %v103 = vld [vmem:[#allocation5 + $0x30] sm:$0xff]
    %v104 = vld [vmem:[#allocation5 + $0x38] sm:$0xff]
    %v105 = vld [vmem:[#allocation5 + $0x40] sm:$0xff]
    %v106 = vld [vmem:[#allocation5 + $0x48] sm:$0xff]
    %v107 = vld [vmem:[#allocation5 + $0x50] sm:$0xff]
    %v108 = vld [vmem:[#allocation5 + $0x58] sm:$0xff]
    %v109 = vld [vmem:[#allocation5 + $0x60] sm:$0xff]
    %v110 = vld [vmem:[#allocation5 + $0x68] sm:$0xff]
    %v111 = vld [vmem:[#allocation5 + $0x70] sm:$0xff]
    %v112 = vld [vmem:[#allocation5 + $0x78] sm:$0xff]
    %v113 = vld [vmem:[#allocation5 + $0x80] sm:$0xff]
    %v114 = vld [vmem:[#allocation5 + $0x88] sm:$0xff]
    %v115 = vld [vmem:[#allocation5 + $0x90] sm:$0xff]
    %v116 = vld [vmem:[#allocation5 + $0x98] sm:$0xff]
    %v117 = vld [vmem:[#allocation5 + $0xa0] sm:$0xff]
    %v118 = vld [vmem:[#allocation5 + $0xa8] sm:$0xff]
    %v119 = vld [vmem:[#allocation5 + $0xb0] sm:$0xff]
    %v120 = vld [vmem:[#allocation5 + $0xb8] sm:$0xff]
    %v121 = vld [vmem:[#allocation5 + $0xc0] sm:$0xff]
    %v122 = vld [vmem:[#allocation5 + $0xc8] sm:$0xff]
    %v123 = vld [vmem:[#allocation5 + $0xd0] sm:$0xff]
    %v124 = vld [vmem:[#allocation5 + $0xd8] sm:$0xff]
    %v125 = vld [vmem:[#allocation5 + $0xe0] sm:$0xff]
    %v126 = vld [vmem:[#allocation5 + $0xe8] sm:$0xff]
    %v127 = vld [vmem:[#allocation5 + $0xf0] sm:$0xff]
    %v128 = vld [vmem:[#allocation5 + $0xf8] sm:$0xff]
    %v129 = vld [vmem:[#allocation5 + $0x100] sm:$0xff]
    %v130 = vld [vmem:[#allocation5 + $0x108] sm:$0xff]
    %v131 = vld [vmem:[#allocation5 + $0x110] sm:$0xff]
    %v132 = vld [vmem:[#allocation5 + $0x118] sm:$0xff]
    %v133 = vld [vmem:[#allocation5 + $0x120] sm:$0xff]
    %v134 = vld [vmem:[#allocation5 + $0x128] sm:$0xff]
    %v135 = vld [vmem:[#allocation5 + $0x130] sm:$0xff]
    %v136 = vld [vmem:[#allocation5 + $0x138] sm:$0xff]
    %v137 = vld [vmem:[#allocation5 + $0x140] sm:$0xff]
    %v138 = vld [vmem:[#allocation5 + $0x148] sm:$0xff]
    %v139 = vld [vmem:[#allocation5 + $0x150] sm:$0xff]
    %v140 = vld [vmem:[#allocation5 + $0x158] sm:$0xff]
    %v141 = vld [vmem:[#allocation5 + $0x160] sm:$0xff]
    %v142 = vld [vmem:[#allocation5 + $0x168] sm:$0xff]
    %v143 = vld [vmem:[#allocation5 + $0x170] sm:$0xff]
    %v144 = vld [vmem:[#allocation5 + $0x178] sm:$0xff]
    %v145 = vrot.slane %v71, 7
    %v146 = vrot.slane %v72, 7
    %vm147 = vcmp.lt.s32.totalorder %v91, 1
    %v148 = vsel %vm147, %v145, %v146
    %v149 = vsel %vm147, %v146, %v145
    %v150 = vsel %vm93, 1, 0
    %v151 = vsel %vm94, 1, 0
    %vm152 = vcmp.eq.s32.totalorder %v150, 1
    %vm153 = vcmp.eq.s32.totalorder %v151, 1
    %v154 = vsel %vm152, %v149, 0.0
    %v155 = vsel %vm153, %v148, 0.0
    %v156 = vrot.slane %v71, 1
    %v157 = vrot.slane %v72, 1
    %vm158 = vcmp.lt.s32.totalorder %v91, 7
    %v159 = vsel %vm158, %v156, %v157
    %v160 = vsel %vm158, %v157, %v156
    %v161 = vsel %vm95, 1, 0
    %v162 = vsel %vm96, 1, 0
    %vm163 = vcmp.eq.s32.totalorder %v161, 1
    %vm164 = vcmp.eq.s32.totalorder %v162, 1
    %v165 = vsel %vm163, %v159, 0.0
    %v166 = vsel %vm164, %v160, 0.0
    %167 = vmatprep.subr.mxu0 0.0
    %168 = vmatpush1.msra.mxu0 %v112
    %169 = vmatprep.subr.mxu0 0.0
    %170 = vmatpush1.msra.mxu0 %v111
    %171 = vmatprep.subr.mxu0 0.0
    %172 = vmatpush1.msra.mxu0 %v110
    %173 = vmatprep.subr.mxu0 0.0
    %174 = vmatpush1.msra.mxu0 %v109
    %175 = vmatprep.subr.mxu0 0.0
    %176 = vmatpush1.msra.mxu0 %v108
    %177 = vmatprep.subr.mxu0 0.0
    %178 = vmatpush1.msra.mxu0 %v107
    %179 = vmatprep.subr.mxu0 0.0
    %180 = vmatpush1.msra.mxu0 %v106
    %181 = vmatprep.subr.mxu0 0.0
    %182 = vmatpush1.msra.mxu0 %v105
    %183 = vmatprep.subr.mxu0 0.0
    %184 = vmatpush1.msra.mxu0 %v104
    %185 = vmatprep.subr.mxu0 0.0
    %186 = vmatpush1.msra.mxu0 %v103
    %187 = vmatprep.subr.mxu0 0.0
    %188 = vmatpush1.msra.mxu0 %v102
    %189 = vmatprep.subr.mxu0 0.0
    %190 = vmatpush1.msra.mxu0 %v101
    %191 = vmatprep.subr.mxu0 0.0
    %192 = vmatpush1.msra.mxu0 %v100
    %193 = vmatprep.subr.mxu0 0.0
    %194 = vmatpush1.msra.mxu0 %v99
    %195 = vmatprep.subr.mxu0 0.0
    %196 = vmatpush1.msra.mxu0 %v98
    %197 = vmatprep.subr.mxu0 0.0
    %198 = vmatpush1.msra.mxu0 %v97
    %199 = vmatprep.subr.mxu0 0.0
    %200 = vmatpush2.msra.mxu0 %v128
    %201 = vmatprep.subr.mxu0 0.0
    %202 = vmatpush2.msra.mxu0 %v127
    %203 = vmatprep.subr.mxu0 0.0
    %204 = vmatpush2.msra.mxu0 %v126
    %205 = vmatprep.subr.mxu0 0.0
    %206 = vmatpush2.msra.mxu0 %v125
    %207 = vmatprep.subr.mxu0 0.0
    %208 = vmatpush2.msra.mxu0 %v124
    %209 = vmatprep.subr.mxu0 0.0
    %210 = vmatpush2.msra.mxu0 %v123
    %211 = vmatprep.subr.mxu0 0.0
    %212 = vmatpush2.msra.mxu0 %v122
    %213 = vmatprep.subr.mxu0 0.0
    %214 = vmatpush2.msra.mxu0 %v121
    %215 = vmatprep.subr.mxu0 0.0
    %216 = vmatpush2.msra.mxu0 %v120
    %217 = vmatprep.subr.mxu0 0.0
    %218 = vmatpush2.msra.mxu0 %v119
    %219 = vmatprep.subr.mxu0 0.0
    %220 = vmatpush2.msra.mxu0 %v118
    %221 = vmatprep.subr.mxu0 0.0
    %222 = vmatpush2.msra.mxu0 %v117
    %223 = vmatprep.subr.mxu0 0.0
    %224 = vmatpush2.msra.mxu0 %v116
    %225 = vmatprep.subr.mxu0 0.0
    %226 = vmatpush2.msra.mxu0 %v115
    %227 = vmatprep.subr.mxu0 0.0
    %228 = vmatpush2.msra.mxu0 %v114
    %229 = vmatprep.subr.mxu0 0.0
    %230 = vmatpush2.msra.mxu0 %v113
    %231 = vmatprep.mubr.f32.mxu0 %v71
    %232 = vmatmul.mubr.f32.gmra.mxu0 %v154
    %v233 = vpop.f32.mrf.mxu0
    %v234 = vadd.f32 0.0, %v233
    %v235 = vpop.f32.mrf.mxu0
    %236 = vmatprep.mubr.f32.mxu0 %v72
    %237 = vmatmul.mubr.f32.gmra.mxu0 %v155
    %v238 = vpop.f32.mrf.mxu0
    %v239 = vadd.f32 0.0, %v238
    %v240 = vpop.f32.mrf.mxu0
    %241 = vdwg.mxu0
    %242 = vmatprep.subr.mxu0 0.0
    %243 = vmatpush1.msra.mxu0 %v144
    %244 = vmatprep.subr.mxu0 0.0
    %245 = vmatpush1.msra.mxu0 %v143
    %246 = vmatprep.subr.mxu0 0.0
    %247 = vmatpush1.msra.mxu0 %v142
    %248 = vmatprep.subr.mxu0 0.0
    %249 = vmatpush1.msra.mxu0 %v141
    %250 = vmatprep.subr.mxu0 0.0
    %251 = vmatpush1.msra.mxu0 %v140
    %252 = vmatprep.subr.mxu0 0.0
    %253 = vmatpush1.msra.mxu0 %v139
    %254 = vmatprep.subr.mxu0 0.0
    %255 = vmatpush1.msra.mxu0 %v138
    %256 = vmatprep.subr.mxu0 0.0
    %257 = vmatpush1.msra.mxu0 %v137
    %258 = vmatprep.subr.mxu0 0.0
    %259 = vmatpush1.msra.mxu0 %v136
    %260 = vmatprep.subr.mxu0 0.0
    %261 = vmatpush1.msra.mxu0 %v135
    %262 = vmatprep.subr.mxu0 0.0
    %263 = vmatpush1.msra.mxu0 %v134
    %264 = vmatprep.subr.mxu0 0.0
    %265 = vmatpush1.msra.mxu0 %v133
    %266 = vmatprep.subr.mxu0 0.0
    %267 = vmatpush1.msra.mxu0 %v132
    %268 = vmatprep.subr.mxu0 0.0
    %269 = vmatpush1.msra.mxu0 %v131
    %270 = vmatprep.subr.mxu0 0.0
    %271 = vmatpush1.msra.mxu0 %v130
    %272 = vmatprep.subr.mxu0 0.0
    %273 = vmatpush1.msra.mxu0 %v129
    %274 = vmatprep.subr.mxu0 0.0
    %275 = vmatpush2.msra.mxu0 0.0
    %276 = vmatprep.subr.mxu0 0.0
    %277 = vmatpush2.msra.mxu0 0.0
    %278 = vmatprep.subr.mxu0 0.0
    %279 = vmatpush2.msra.mxu0 0.0
    %280 = vmatprep.subr.mxu0 0.0
    %281 = vmatpush2.msra.mxu0 0.0
    %282 = vmatprep.subr.mxu0 0.0
    %283 = vmatpush2.msra.mxu0 0.0
    %284 = vmatprep.subr.mxu0 0.0
    %285 = vmatpush2.msra.mxu0 0.0
    %286 = vmatprep.subr.mxu0 0.0
    %287 = vmatpush2.msra.mxu0 0.0
    %288 = vmatprep.subr.mxu0 0.0
    %289 = vmatpush2.msra.mxu0 0.0
    %290 = vmatprep.subr.mxu0 0.0
    %291 = vmatpush2.msra.mxu0 0.0
    %292 = vmatprep.subr.mxu0 0.0
    %293 = vmatpush2.msra.mxu0 0.0
    %294 = vmatprep.subr.mxu0 0.0
    %295 = vmatpush2.msra.mxu0 0.0
    %296 = vmatprep.subr.mxu0 0.0
    %297 = vmatpush2.msra.mxu0 0.0
    %298 = vmatprep.subr.mxu0 0.0
    %299 = vmatpush2.msra.mxu0 0.0
    %300 = vmatprep.subr.mxu0 0.0
    %301 = vmatpush2.msra.mxu0 0.0
    %302 = vmatprep.subr.mxu0 0.0
    %303 = vmatpush2.msra.mxu0 0.0
    %304 = vmatprep.subr.mxu0 0.0
    %305 = vmatpush2.msra.mxu0 0.0
    %306 = vmatprep.mubr.f32.mxu0 0.0
    %307 = vmatmul.mubr.f32.gmra.mxu0 %v165
    %v308 = vpop.f32.mrf.mxu0
    %v309 = vadd.f32 %v234, %v308
    %v310 = vpop.f32.mrf.mxu0
    %311 = vmatprep.mubr.f32.mxu0 0.0
    %312 = vmatmul.mubr.f32.gmra.mxu0 %v166
    %v313 = vpop.f32.mrf.mxu0
    %v314 = vadd.f32 %v239, %v313
    %v315 = vpop.f32.mrf.mxu0
    %316 = vdwg.mxu0
    %v317 = vadd.f32 %v309, %v314
    %v318 = vrot.slane %v317, 4
    %v319 = vadd.f32 %v317, %v318
    %v320 = vrot.slane %v319, 2
    %v321 = vadd.f32 %v319, %v320
    %v322 = vrot.slane %v321, 1
    %v323 = vadd.f32 %v321, %v322
    %v324 = vmul.f32 %v309, %v309
    %v325 = vmul.f32 %v314, %v314
    %v326 = vadd.f32 %v324, %v325
    %v327 = vrot.slane %v326, 4
    %v328 = vadd.f32 %v326, %v327
    %v329 = vrot.slane %v328, 2
    %v330 = vadd.f32 %v328, %v329
    %v331 = vrot.slane %v330, 1
    %v332 = vadd.f32 %v330, %v331
    %vm333 = vcmask 1040384
    %v334 = vsel %vm333, %v323, %v332
    %335 = vmatprep.subr.mxu0 0.0
    %336 = vmatpush1.msra.mxu0 %v88
    %337 = vmatprep.subr.mxu0 0.0
    %338 = vmatpush1.msra.mxu0 %v87
    %339 = vmatprep.subr.mxu0 0.0
    %340 = vmatpush1.msra.mxu0 %v86
    %341 = vmatprep.subr.mxu0 0.0
    %342 = vmatpush1.msra.mxu0 %v85
    %343 = vmatprep.subr.mxu0 0.0
    %344 = vmatpush1.msra.mxu0 %v84
    %345 = vmatprep.subr.mxu0 0.0
    %346 = vmatpush1.msra.mxu0 %v83
    %347 = vmatprep.subr.mxu0 0.0
    %348 = vmatpush1.msra.mxu0 %v82
    %349 = vmatprep.subr.mxu0 0.0
    %350 = vmatpush1.msra.mxu0 %v81
    %351 = vmatprep.subr.mxu0 0.0
    %352 = vmatpush1.msra.mxu0 %v80
    %353 = vmatprep.subr.mxu0 0.0
    %354 = vmatpush1.msra.mxu0 %v79
    %355 = vmatprep.subr.mxu0 0.0
    %356 = vmatpush1.msra.mxu0 %v78
    %357 = vmatprep.subr.mxu0 0.0
    %358 = vmatpush1.msra.mxu0 %v77
    %359 = vmatprep.subr.mxu0 0.0
    %360 = vmatpush1.msra.mxu0 %v76
    %361 = vmatprep.subr.mxu0 0.0
    %362 = vmatpush1.msra.mxu0 %v75
    %363 = vmatprep.subr.mxu0 0.0
    %364 = vmatpush1.msra.mxu0 %v74
    %365 = vmatprep.subr.mxu0 0.0
    %366 = vmatpush1.msra.mxu0 %v73
    %367 = vmatprep.subr.mxu0 0.0
    %368 = vmatpush2.msra.mxu0 0.0
    %369 = vmatprep.subr.mxu0 0.0
    %370 = vmatpush2.msra.mxu0 0.0
    %371 = vmatprep.subr.mxu0 0.0
    %372 = vmatpush2.msra.mxu0 0.0
    %373 = vmatprep.subr.mxu0 0.0
    %374 = vmatpush2.msra.mxu0 0.0
    %375 = vmatprep.subr.mxu0 0.0
    %376 = vmatpush2.msra.mxu0 0.0
    %377 = vmatprep.subr.mxu0 0.0
    %378 = vmatpush2.msra.mxu0 0.0
    %379 = vmatprep.subr.mxu0 0.0
    %380 = vmatpush2.msra.mxu0 0.0
    %381 = vmatprep.subr.mxu0 0.0
    %382 = vmatpush2.msra.mxu0 0.0
    %383 = vmatprep.subr.mxu0 0.0
    %384 = vmatpush2.msra.mxu0 0.0
    %385 = vmatprep.subr.mxu0 0.0
    %386 = vmatpush2.msra.mxu0 0.0
    %387 = vmatprep.subr.mxu0 0.0
    %388 = vmatpush2.msra.mxu0 0.0
    %389 = vmatprep.subr.mxu0 0.0
    %390 = vmatpush2.msra.mxu0 0.0
    %391 = vmatprep.subr.mxu0 0.0
    %392 = vmatpush2.msra.mxu0 0.0
    %393 = vmatprep.subr.mxu0 0.0
    %394 = vmatpush2.msra.mxu0 0.0
    %395 = vmatprep.subr.mxu0 0.0
    %396 = vmatpush2.msra.mxu0 0.0
    %397 = vmatprep.subr.mxu0 0.0
    %398 = vmatpush2.msra.mxu0 0.0
    %399 = vmatprep.mubr.f32.mxu0 0.0
    %400 = vmatmul.mubr.f32.gmra.mxu0 %v334
    %v401 = vpop.f32.mrf.mxu0
    %v402 = vadd.f32 0.0, %v401
    %v403 = vpop.f32.mrf.mxu0
    %404 = vdwg.mxu0
    %v405 = vmul.f32 %v402, 0.001953125
    %v406 = vmul.f32 %v405, %v405
    %v408 = vrot.slane %v406, 7
    %v410 = vsub.f32 %v405, %v408
    %v411 = vadd.f32 %v410, 1e-05
    %v412 = vrsqrt.pop %v411
    %v414 = vrot.slane %v412, 1
    %v416 = vmul.f32 %v89, %v414
    %v417 = vmul.f32 %v405, %v416
    %v419 = vrot.slane %v417, 7
    %v421 = vsub.f32 %v89, %v419
    %v422 = vlaneseq
    %v423 = vshrl.u32 %v422, 7
    %v424 = vsub.s32 0, %v423
    %v425 = vrot.slane %v416, %v424
    %v426 = vmul.f32 %v309, %v425
    %v427 = vmul.f32 %v314, %v425
    %v428 = vlaneseq
    %v429 = vshrl.u32 %v428, 7
    %v430 = vsub.s32 1, %v429
    %v431 = vrot.slane %v421, %v430
    %v432 = vadd.f32 %v426, %v431
    %v433 = vadd.f32 %v427, %v431
    %v434 = vmax.f32 %v432, 0.0
    %v435 = vmax.f32 %v433, 0.0
    %s436 = scalar_lea.vmem [#allocation5], 384
    %v437 = vld [vmem:[%s436] sm:$0xff]
    %v438 = vld [vmem:[%s436 + $0x8] sm:$0xff]
    %v439 = vld [vmem:[%s436 + $0x10] sm:$0xff]
    %v440 = vld [vmem:[%s436 + $0x18] sm:$0xff]
    %v441 = vld [vmem:[%s436 + $0x20] sm:$0xff]
    %v442 = vld [vmem:[%s436 + $0x28] sm:$0xff]
    %v443 = vld [vmem:[%s436 + $0x30] sm:$0xff]
    %v444 = vld [vmem:[%s436 + $0x38] sm:$0xff]
    %v445 = vld [vmem:[%s436 + $0x40] sm:$0xff]
    %v446 = vld [vmem:[%s436 + $0x48] sm:$0xff]
    %v447 = vld [vmem:[%s436 + $0x50] sm:$0xff]
    %v448 = vld [vmem:[%s436 + $0x58] sm:$0xff]
    %v449 = vld [vmem:[%s436 + $0x60] sm:$0xff]
    %v450 = vld [vmem:[%s436 + $0x68] sm:$0xff]
    %v451 = vld [vmem:[%s436 + $0x70] sm:$0xff]
    %v452 = vld [vmem:[%s436 + $0x78] sm:$0xff]
    %v453 = vld [vmem:[%s436 + $0x80] sm:$0xff]
    %v454 = vld [vmem:[%s436 + $0x88] sm:$0xff]
    %v455 = vld [vmem:[%s436 + $0x90] sm:$0xff]
    %v456 = vld [vmem:[%s436 + $0x98] sm:$0xff]
    %v457 = vld [vmem:[%s436 + $0xa0] sm:$0xff]
    %v458 = vld [vmem:[%s436 + $0xa8] sm:$0xff]
    %v459 = vld [vmem:[%s436 + $0xb0] sm:$0xff]
    %v460 = vld [vmem:[%s436 + $0xb8] sm:$0xff]
    %v461 = vld [vmem:[%s436 + $0xc0] sm:$0xff]
    %v462 = vld [vmem:[%s436 + $0xc8] sm:$0xff]
    %v463 = vld [vmem:[%s436 + $0xd0] sm:$0xff]
    %v464 = vld [vmem:[%s436 + $0xd8] sm:$0xff]
    %v465 = vld [vmem:[%s436 + $0xe0] sm:$0xff]
    %v466 = vld [vmem:[%s436 + $0xe8] sm:$0xff]
    %v467 = vld [vmem:[%s436 + $0xf0] sm:$0xff]
    %v468 = vld [vmem:[%s436 + $0xf8] sm:$0xff]
    %v469 = vld [vmem:[%s436 + $0x100] sm:$0xff]
    %v470 = vld [vmem:[%s436 + $0x108] sm:$0xff]
    %v471 = vld [vmem:[%s436 + $0x110] sm:$0xff]
    %v472 = vld [vmem:[%s436 + $0x118] sm:$0xff]
    %v473 = vld [vmem:[%s436 + $0x120] sm:$0xff]
    %v474 = vld [vmem:[%s436 + $0x128] sm:$0xff]
    %v475 = vld [vmem:[%s436 + $0x130] sm:$0xff]
    %v476 = vld [vmem:[%s436 + $0x138] sm:$0xff]
    %v477 = vld [vmem:[%s436 + $0x140] sm:$0xff]
    %v478 = vld [vmem:[%s436 + $0x148] sm:$0xff]
    %v479 = vld [vmem:[%s436 + $0x150] sm:$0xff]
    %v480 = vld [vmem:[%s436 + $0x158] sm:$0xff]
    %v481 = vld [vmem:[%s436 + $0x160] sm:$0xff]
    %v482 = vld [vmem:[%s436 + $0x168] sm:$0xff]
    %v483 = vld [vmem:[%s436 + $0x170] sm:$0xff]
    %v484 = vld [vmem:[%s436 + $0x178] sm:$0xff]
    %v485 = vrot.slane %v434, 7
    %v486 = vrot.slane %v435, 7
    %v487 = vsel %vm147, %v485, %v486
    %v488 = vsel %vm147, %v486, %v485
    %v489 = vsel %vm152, %v488, 0.0
    %v490 = vsel %vm153, %v487, 0.0
    %v491 = vrot.slane %v434, 1
    %v492 = vrot.slane %v435, 1
    %v493 = vsel %vm158, %v491, %v492
    %v494 = vsel %vm158, %v492, %v491
    %v495 = vsel %vm163, %v493, 0.0
    %v496 = vsel %vm164, %v494, 0.0
    %497 = vmatprep.subr.mxu0 0.0
    %498 = vmatpush1.msra.mxu0 %v452
    %499 = vmatprep.subr.mxu0 0.0
    %500 = vmatpush1.msra.mxu0 %v451
    %501 = vmatprep.subr.mxu0 0.0
    %502 = vmatpush1.msra.mxu0 %v450
    %503 = vmatprep.subr.mxu0 0.0
    %504 = vmatpush1.msra.mxu0 %v449
    %505 = vmatprep.subr.mxu0 0.0
    %506 = vmatpush1.msra.mxu0 %v448
    %507 = vmatprep.subr.mxu0 0.0
    %508 = vmatpush1.msra.mxu0 %v447
    %509 = vmatprep.subr.mxu0 0.0
    %510 = vmatpush1.msra.mxu0 %v446
    %511 = vmatprep.subr.mxu0 0.0
    %512 = vmatpush1.msra.mxu0 %v445
    %513 = vmatprep.subr.mxu0 0.0
    %514 = vmatpush1.msra.mxu0 %v444
    %515 = vmatprep.subr.mxu0 0.0
    %516 = vmatpush1.msra.mxu0 %v443
    %517 = vmatprep.subr.mxu0 0.0
    %518 = vmatpush1.msra.mxu0 %v442
    %519 = vmatprep.subr.mxu0 0.0
    %520 = vmatpush1.msra.mxu0 %v441
    %521 = vmatprep.subr.mxu0 0.0
    %522 = vmatpush1.msra.mxu0 %v440
    %523 = vmatprep.subr.mxu0 0.0
    %524 = vmatpush1.msra.mxu0 %v439
    %525 = vmatprep.subr.mxu0 0.0
    %526 = vmatpush1.msra.mxu0 %v438
    %527 = vmatprep.subr.mxu0 0.0
    %528 = vmatpush1.msra.mxu0 %v437
    %529 = vmatprep.subr.mxu0 0.0
    %530 = vmatpush2.msra.mxu0 %v468
    %531 = vmatprep.subr.mxu0 0.0
    %532 = vmatpush2.msra.mxu0 %v467
    %533 = vmatprep.subr.mxu0 0.0
    %534 = vmatpush2.msra.mxu0 %v466
    %535 = vmatprep.subr.mxu0 0.0
    %536 = vmatpush2.msra.mxu0 %v465
    %537 = vmatprep.subr.mxu0 0.0
    %538 = vmatpush2.msra.mxu0 %v464
    %539 = vmatprep.subr.mxu0 0.0
    %540 = vmatpush2.msra.mxu0 %v463
    %541 = vmatprep.subr.mxu0 0.0
    %542 = vmatpush2.msra.mxu0 %v462
    %543 = vmatprep.subr.mxu0 0.0
    %544 = vmatpush2.msra.mxu0 %v461
    %545 = vmatprep.subr.mxu0 0.0
    %546 = vmatpush2.msra.mxu0 %v460
    %547 = vmatprep.subr.mxu0 0.0
    %548 = vmatpush2.msra.mxu0 %v459
    %549 = vmatprep.subr.mxu0 0.0
    %550 = vmatpush2.msra.mxu0 %v458
    %551 = vmatprep.subr.mxu0 0.0
    %552 = vmatpush2.msra.mxu0 %v457
    %553 = vmatprep.subr.mxu0 0.0
    %554 = vmatpush2.msra.mxu0 %v456
    %555 = vmatprep.subr.mxu0 0.0
    %556 = vmatpush2.msra.mxu0 %v455
    %557 = vmatprep.subr.mxu0 0.0
    %558 = vmatpush2.msra.mxu0 %v454
    %559 = vmatprep.subr.mxu0 0.0
    %560 = vmatpush2.msra.mxu0 %v453
    %561 = vmatprep.mubr.f32.mxu0 %v434
    %562 = vmatmul.mubr.f32.gmra.mxu0 %v489
    %v563 = vpop.f32.mrf.mxu0
    %v564 = vadd.f32 0.0, %v563
    %v565 = vpop.f32.mrf.mxu0
    %566 = vmatprep.mubr.f32.mxu0 %v435
    %567 = vmatmul.mubr.f32.gmra.mxu0 %v490
    %v568 = vpop.f32.mrf.mxu0
    %v569 = vadd.f32 0.0, %v568
    %v570 = vpop.f32.mrf.mxu0
    %571 = vdwg.mxu0
    %572 = vmatprep.subr.mxu0 0.0
    %573 = vmatpush1.msra.mxu0 %v484
    %574 = vmatprep.subr.mxu0 0.0
    %575 = vmatpush1.msra.mxu0 %v483
    %576 = vmatprep.subr.mxu0 0.0
    %577 = vmatpush1.msra.mxu0 %v482
    %578 = vmatprep.subr.mxu0 0.0
    %579 = vmatpush1.msra.mxu0 %v481
    %580 = vmatprep.subr.mxu0 0.0
    %581 = vmatpush1.msra.mxu0 %v480
    %582 = vmatprep.subr.mxu0 0.0
    %583 = vmatpush1.msra.mxu0 %v479
    %584 = vmatprep.subr.mxu0 0.0
    %585 = vmatpush1.msra.mxu0 %v478
    %586 = vmatprep.subr.mxu0 0.0
    %587 = vmatpush1.msra.mxu0 %v477
    %588 = vmatprep.subr.mxu0 0.0
    %589 = vmatpush1.msra.mxu0 %v476
    %590 = vmatprep.subr.mxu0 0.0
    %591 = vmatpush1.msra.mxu0 %v475
    %592 = vmatprep.subr.mxu0 0.0
    %593 = vmatpush1.msra.mxu0 %v474
    %594 = vmatprep.subr.mxu0 0.0
    %595 = vmatpush1.msra.mxu0 %v473
    %596 = vmatprep.subr.mxu0 0.0
    %597 = vmatpush1.msra.mxu0 %v472
    %598 = vmatprep.subr.mxu0 0.0
    %599 = vmatpush1.msra.mxu0 %v471
    %600 = vmatprep.subr.mxu0 0.0
    %601 = vmatpush1.msra.mxu0 %v470
    %602 = vmatprep.subr.mxu0 0.0
    %603 = vmatpush1.msra.mxu0 %v469
    %604 = vmatprep.subr.mxu0 0.0
    %605 = vmatpush2.msra.mxu0 0.0
    %606 = vmatprep.subr.mxu0 0.0
    %607 = vmatpush2.msra.mxu0 0.0
    %608 = vmatprep.subr.mxu0 0.0
    %609 = vmatpush2.msra.mxu0 0.0
    %610 = vmatprep.subr.mxu0 0.0
    %611 = vmatpush2.msra.mxu0 0.0
    %612 = vmatprep.subr.mxu0 0.0
    %613 = vmatpush2.msra.mxu0 0.0
    %614 = vmatprep.subr.mxu0 0.0
    %615 = vmatpush2.msra.mxu0 0.0
    %616 = vmatprep.subr.mxu0 0.0
    %617 = vmatpush2.msra.mxu0 0.0
    %618 = vmatprep.subr.mxu0 0.0
    %619 = vmatpush2.msra.mxu0 0.0
    %620 = vmatprep.subr.mxu0 0.0
    %621 = vmatpush2.msra.mxu0 0.0
    %622 = vmatprep.subr.mxu0 0.0
    %623 = vmatpush2.msra.mxu0 0.0
    %624 = vmatprep.subr.mxu0 0.0
    %625 = vmatpush2.msra.mxu0 0.0
    %626 = vmatprep.subr.mxu0 0.0
    %627 = vmatpush2.msra.mxu0 0.0
    %628 = vmatprep.subr.mxu0 0.0
    %629 = vmatpush2.msra.mxu0 0.0
    %630 = vmatprep.subr.mxu0 0.0
    %631 = vmatpush2.msra.mxu0 0.0
    %632 = vmatprep.subr.mxu0 0.0
    %633 = vmatpush2.msra.mxu0 0.0
    %634 = vmatprep.subr.mxu0 0.0
    %635 = vmatpush2.msra.mxu0 0.0
    %636 = vmatprep.mubr.f32.mxu0 0.0
    %637 = vmatmul.mubr.f32.gmra.mxu0 %v495
    %v638 = vpop.f32.mrf.mxu0
    %v639 = vadd.f32 %v564, %v638
    %v640 = vpop.f32.mrf.mxu0
    %641 = vmatprep.mubr.f32.mxu0 0.0
    %642 = vmatmul.mubr.f32.gmra.mxu0 %v496
    %v643 = vpop.f32.mrf.mxu0
    %v644 = vadd.f32 %v569, %v643
    %v645 = vpop.f32.mrf.mxu0
    %646 = vdwg.mxu0
    %v647 = vadd.f32 %v639, %v644
    %v648 = vrot.slane %v647, 4
    %v649 = vadd.f32 %v647, %v648
    %v650 = vrot.slane %v649, 2
    %v651 = vadd.f32 %v649, %v650
    %v652 = vrot.slane %v651, 1
    %v653 = vadd.f32 %v651, %v652
    %v654 = vmul.f32 %v639, %v639
    %v655 = vmul.f32 %v644, %v644
    %v656 = vadd.f32 %v654, %v655
    %v657 = vrot.slane %v656, 4
    %v658 = vadd.f32 %v656, %v657
    %v659 = vrot.slane %v658, 2
    %v660 = vadd.f32 %v658, %v659
    %v661 = vrot.slane %v660, 1
    %v662 = vadd.f32 %v660, %v661
    %v663 = vsel %vm333, %v653, %v662
    %664 = vmatprep.subr.mxu0 0.0
    %665 = vmatpush1.msra.mxu0 %v88
    %666 = vmatprep.subr.mxu0 0.0
    %667 = vmatpush1.msra.mxu0 %v87
    %668 = vmatprep.subr.mxu0 0.0
    %669 = vmatpush1.msra.mxu0 %v86
    %670 = vmatprep.subr.mxu0 0.0
    %671 = vmatpush1.msra.mxu0 %v85
    %672 = vmatprep.subr.mxu0 0.0
    %673 = vmatpush1.msra.mxu0 %v84
    %674 = vmatprep.subr.mxu0 0.0
    %675 = vmatpush1.msra.mxu0 %v83
    %676 = vmatprep.subr.mxu0 0.0
    %677 = vmatpush1.msra.mxu0 %v82
    %678 = vmatprep.subr.mxu0 0.0
    %679 = vmatpush1.msra.mxu0 %v81
    %680 = vmatprep.subr.mxu0 0.0
    %681 = vmatpush1.msra.mxu0 %v80
    %682 = vmatprep.subr.mxu0 0.0
    %683 = vmatpush1.msra.mxu0 %v79
    %684 = vmatprep.subr.mxu0 0.0
    %685 = vmatpush1.msra.mxu0 %v78
    %686 = vmatprep.subr.mxu0 0.0
    %687 = vmatpush1.msra.mxu0 %v77
    %688 = vmatprep.subr.mxu0 0.0
    %689 = vmatpush1.msra.mxu0 %v76
    %690 = vmatprep.subr.mxu0 0.0
    %691 = vmatpush1.msra.mxu0 %v75
    %692 = vmatprep.subr.mxu0 0.0
    %693 = vmatpush1.msra.mxu0 %v74
    %694 = vmatprep.subr.mxu0 0.0
    %695 = vmatpush1.msra.mxu0 %v73
    %696 = vmatprep.subr.mxu0 0.0
    %697 = vmatpush2.msra.mxu0 0.0
    %698 = vmatprep.subr.mxu0 0.0
    %699 = vmatpush2.msra.mxu0 0.0
    %700 = vmatprep.subr.mxu0 0.0
    %701 = vmatpush2.msra.mxu0 0.0
    %702 = vmatprep.subr.mxu0 0.0
    %703 = vmatpush2.msra.mxu0 0.0
    %704 = vmatprep.subr.mxu0 0.0
    %705 = vmatpush2.msra.mxu0 0.0
    %706 = vmatprep.subr.mxu0 0.0
    %707 = vmatpush2.msra.mxu0 0.0
    %708 = vmatprep.subr.mxu0 0.0
    %709 = vmatpush2.msra.mxu0 0.0
    %710 = vmatprep.subr.mxu0 0.0
    %711 = vmatpush2.msra.mxu0 0.0
    %712 = vmatprep.subr.mxu0 0.0
    %713 = vmatpush2.msra.mxu0 0.0
    %714 = vmatprep.subr.mxu0 0.0
    %715 = vmatpush2.msra.mxu0 0.0
    %716 = vmatprep.subr.mxu0 0.0
    %717 = vmatpush2.msra.mxu0 0.0
    %718 = vmatprep.subr.mxu0 0.0
    %719 = vmatpush2.msra.mxu0 0.0
    %720 = vmatprep.subr.mxu0 0.0
    %721 = vmatpush2.msra.mxu0 0.0
    %722 = vmatprep.subr.mxu0 0.0
    %723 = vmatpush2.msra.mxu0 0.0
    %724 = vmatprep.subr.mxu0 0.0
    %725 = vmatpush2.msra.mxu0 0.0
    %726 = vmatprep.subr.mxu0 0.0
    %727 = vmatpush2.msra.mxu0 0.0
    %728 = vmatprep.mubr.f32.mxu0 0.0
    %729 = vmatmul.mubr.f32.gmra.mxu0 %v663
    %v730 = vpop.f32.mrf.mxu0
    %v731 = vadd.f32 0.0, %v730
    %v732 = vpop.f32.mrf.mxu0
    %733 = vdwg.mxu0
    %v734 = vmul.f32 %v731, 0.001953125
    %v735 = vmul.f32 %v734, %v734
    %v737 = vrot.slane %v735, 7
    %v739 = vsub.f32 %v734, %v737
    %v740 = vadd.f32 %v739, 1e-05
    %v741 = vrsqrt.pop %v740
    %v743 = vrot.slane %v741, 7
    %v745 = vmul.f32 %v89, %v743
    %v747 = vrot.slane %v745, 2
    %v749 = vmul.f32 %v734, %v747
    %v751 = vrot.slane %v749, 5
    %v753 = vsub.f32 %v89, %v751
    %v754 = vlaneseq
    %v755 = vshrl.u32 %v754, 7
    %v756 = vsub.s32 2, %v755
    %v757 = vrot.slane %v745, %v756
    %v758 = vmul.f32 %v639, %v757
    %v759 = vmul.f32 %v644, %v757
    %v760 = vlaneseq
    %v761 = vshrl.u32 %v760, 7
    %v762 = vsub.s32 3, %v761
    %v763 = vrot.slane %v753, %v762
    %v764 = vadd.f32 %v758, %v763
    %v765 = vadd.f32 %v759, %v763
    %v766 = vadd.f32 %v764, %v71
    %v767 = vadd.f32 %v765, %v72
    %v768 = vmax.f32 %v766, 0.0
    %v769 = vmax.f32 %v767, 0.0
    %770 = vst [vmem:[#allocation10] sm:$0xff] %v768
    %771 = vst [vmem:[#allocation10 + $0x8] sm:$0xff] %v769
    // Predicated region
    $region34: #{tpu_custom_call.1} parent=1 // pred_check
      _
    $region35: #{tpu_custom_call.1} parent=1 // pred_check_branch
      %773 = sbr.rel (0) target = $region37
    $region36: #{tpu_custom_call.1} parent=1 // pred_region
      %s775 = ssub.s32 256, 256
      %776 = vsyncadd [#allocation4], %s775
      %s777 = sshll.u32 [#allocation10], 4
      %s778 = int_to_ptr.vmem [resolvable:$true] %s777
      %783 = dma.vmem_to_hbm [thread:$0]  %s778, 256, %s4, [#allocation4], 128, 128, 8
    $region37: #{tpu_custom_call.1} parent=1 // pred_fallthru
      _
    // Predicated region
    $region38: #{tpu_custom_call.1} parent=1 // pred_check
      _
    $region39: #{tpu_custom_call.1} parent=1 // pred_check_branch
      %785 = sbr.rel (0) target = $region41
    $region40: #{tpu_custom_call.1} parent=1 // pred_region
      %786 = dma.done [#allocation4], 256
    $region41: #{tpu_custom_call.1} parent=1 // pred_fallthru
      _
    %787 = vsyncpa [#allocation3], 1
    %788 = vsyncpa [#allocation6], 1
    %789 = vsyncpa [#allocation9], 1
    %790 = vsyncpa [#allocation4], 1

</llo_original>
